<compile_context>
chip_gen: v7x
topology: tpu7x:2x2x1
jax: 0.10.0
libtpu: 0.0.40
codegen_flags: <defaults>
</compile_context>

<pallas_src>
import functools

import jax
import jax.numpy as jnp
from jax import lax
from jax.experimental import pallas as pl
from jax.experimental.pallas import tpu as pltpu


# Sentinel sort-key values.  Plain Python floats on purpose: jnp constants at
# module scope get captured by the kernel trace and rejected by pallas_call.
_POS_FILL = 3.0e38   # "no positive candidate": larger than any real key
_NEG_FILL = 0.0      # "no negative candidate": smaller than any real key


def _round_up(v, m):
    return (v + m - 1) // m * m


def _smallest_k(keys, k, fill):
    """k smallest values per column (ascending) -> (k, T).

    Real keys are unique per column (index-embedded), so each rank removes
    exactly one entry: multiplicities match Python sorted() semantics."""
    outs = []
    for r in range(k):
        m = jnp.min(keys, axis=0, keepdims=True)       # one reduce per rank
        outs.append(m)
        if r + 1 < k:
            keys = jnp.where(keys == m, fill, keys)
    return jnp.concatenate(outs, axis=0)


def _largest_k(keys, k, fill):
    """k largest values per column (descending) -> (k, T)."""
    outs = []
    for r in range(k):
        m = jnp.max(keys, axis=0, keepdims=True)
        outs.append(m)
        if r + 1 < k:
            keys = jnp.where(keys == m, fill, keys)
    return jnp.concatenate(outs, axis=0)


def _retag(vals, start, keep):
    """Replace the low index bits of running-accumulator keys with fresh
    indices >= `start` so they can never bit-collide with the current tile."""
    k, t = vals.shape
    bits = lax.bitcast_convert_type(vals, jnp.int32)
    idx = lax.broadcasted_iota(jnp.int32, (k, t), 0) + start
    return lax.bitcast_convert_type((bits & keep) | idx, jnp.float32)


def _triplet_cosine_kernel(xn_cand_ref, xnT_row_ref, lab_cand_ref, lab_row_ref,
                           hinge_ref, correct_ref,
                           acc_pos_ref, acc_neg_ref,
                           *, margin, tile, low_bits):
    j = pl.program_id(1)
    keep = -(1 << low_bits)          # int32 mask clearing the low index bits

    @pl.when(j == 0)
    def _init():
        acc_pos_ref[...] = jnp.full(acc_pos_ref.shape, _POS_FILL, jnp.float32)
        acc_neg_ref[...] = jnp.full(acc_neg_ref.shape, _NEG_FILL, jnp.float32)

    # (tile, tile) block of cosine similarities: sublanes = streamed
    # candidates, lanes = resident row block.  Inputs are pre-normalized, so
    # this is one natural (M,K)x(K,N) MXU product with f32 accumulation.
    simT = lax.dot_general(xn_cand_ref[...], xnT_row_ref[...],
                           (((1,), (0,)), ((), ())),
                           preferred_element_type=jnp.float32)

    # Monotone sort keys on similarities (1 - sim is never materialized on the
    # tile): sim + 2 > 0, so its f32 bit pattern orders like the value; the
    # low `low_bits` mantissa bits are overwritten with the candidate's
    # sublane index, making every real key in a column unique.  The <= 2^-12
    # value perturbation is far below bf16 matmul noise.
    bits = lax.bitcast_convert_type(simT + 2.0, jnp.int32)
    cand_idx = lax.broadcasted_iota(jnp.int32, simT.shape, 0)  # hoisted, shared
    keys = lax.bitcast_convert_type((bits & keep) | cand_idx, jnp.float32)

    lab_c = lab_cand_ref[...]        # (tile, 1) streamed candidate labels
    lab_r = lab_row_ref[...]         # (1, tile) resident row labels
    same = lab_c == lab_r
    # Padded candidates carry label -1 and can never be positives of a valid
    # row, so validity only gates the negative side.
    negm = jnp.logical_and(jnp.logical_not(same), lab_c >= 0)

    key_pos = jnp.where(same, keys, _POS_FILL)
    key_neg = jnp.where(negm, keys, _NEG_FILL)

    # Fold the running accumulators into this tile's selection (re-tagged with
    # indices >= tile so they cannot collide with tile keys), then keep
    #   * the 3 smallest positive-pair sims  (== 3 largest positive distances)
    #   * the 6 largest  negative-pair sims  (== 6 smallest negative distances)
    acc_pos = _retag(acc_pos_ref[...], tile, keep)
    acc_neg = _retag(acc_neg_ref[...], tile, keep)
    acc_pos_ref[...] = _smallest_k(
        jnp.concatenate([key_pos, acc_pos], axis=0), 3, _POS_FILL)
    acc_neg_ref[...] = _largest_k(
        jnp.concatenate([key_neg, acc_neg], axis=0), 6, _NEG_FILL)

    @pl.when(j == pl.num_programs(1) - 1)
    def _finalize():
        # TODO(synk): rows with <3 positives or <6 negatives fall back to the
        # sentinels (hinge=0, correct=1) instead of raising like Python list
        # indexing in the reference.
        sim_ap = acc_pos_ref[2:3, :] - 2.0   # 3rd-smallest positive sim
        sim_an = acc_neg_ref[5:6, :] - 2.0   # 6th-largest  negative sim
        # dist = 1 - sim  =>  dist_ap - dist_an == sim_an - sim_ap.
        hinge_ref[...] = jnp.maximum(sim_an - sim_ap + margin, 0.0)
        correct_ref[...] = (sim_ap > sim_an).astype(jnp.float32)


def triplet_loss_cosine(inputs, targets, margin=0.0, block=256,
                        matmul_dtype=jnp.bfloat16):
    """TripletLoss_cosine forward.  inputs: (n, d) float; targets: (n,) int.

    Returns (loss, prec).  block must-be-will-be rounded to a multiple of 128;
    256 is safe on every TPU generation, v5e/v6e can use 512.  matmul_dtype is
    the storage/MXU dtype of the pre-normalized features (bfloat16 for speed,
    float32 escape hatch for parity testing)."""
    n, d = inputs.shape
    t = _round_up(max(1, min(int(block), n)), 128)   # lane / MXU aligned tile
    n_pad = _round_up(n, t)
    d_pad = _round_up(d, 128)
    nb = n_pad // t
    low_bits = (t + 8).bit_length()   # index bits folded into the sort keys

    # Pre-normalize once in f32 and store BOTH layouts in matmul_dtype: the
    # (n, d) copy is streamed nb times (bf16 halves that HBM traffic), the
    # (d, n) copy is the resident MXU RHS (no in-kernel transpose), and the
    # kernel needs no normalization work or scratch at all.
    x = jnp.zeros((n_pad, d_pad), jnp.float32).at[:n, :d].set(
        inputs.astype(jnp.float32))
    inv = lax.rsqrt(jnp.maximum(jnp.sum(x * x, axis=-1, keepdims=True),
                                1e-16))          # (PyTorch cosine eps=1e-8)^2
    xn = (x * inv).astype(matmul_dtype)          # (n_pad, d_pad)
    xnT = xn.T                                   # (d_pad, n_pad)

    labs = jnp.full((n_pad,), -1, jnp.int32).at[:n].set(
        targets.astype(jnp.int32))
    lab_cand = labs.reshape(n_pad, 1)            # candidate labels (sublanes)
    lab_row = labs.reshape(1, n_pad)             # resident row labels (lanes)

    # VMEM budget derived from the tile sizes, clamped below v7x's 64 MiB/TC.
    itemsize = jnp.dtype(matmul_dtype).itemsize
    vmem_est = (4 * t * d_pad * itemsize         # double-buffered feature tiles
                + 10 * t * t * 4                 # live (T,T) selection temps
                + (2 << 20))                     # labels, outputs, scratch
    vmem_limit = int(min(max(vmem_est, 32 << 20), 56 << 20))

    kernel = functools.partial(_triplet_cosine_kernel, margin=float(margin),
                               tile=t, low_bits=low_bits)
    hinge, correct = pl.pallas_call(
        kernel,
        out_shape=(jax.ShapeDtypeStruct((1, n_pad), jnp.float32),
                   jax.ShapeDtypeStruct((1, n_pad), jnp.float32)),
        grid_spec=pltpu.PrefetchScalarGridSpec(
            num_scalar_prefetch=0,
            grid=(nb, nb),                   # (resident row block, candidates)
            in_specs=[
                pl.BlockSpec((t, d_pad), lambda i, j: (j, 0)),   # streamed x
                pl.BlockSpec((d_pad, t), lambda i, j: (0, i)),   # resident xT
                pl.BlockSpec((t, 1), lambda i, j: (j, 0)),       # cand labels
                pl.BlockSpec((1, t), lambda i, j: (0, i)),       # row labels
            ],
            out_specs=(pl.BlockSpec((1, t), lambda i, j: (0, i)),
                       pl.BlockSpec((1, t), lambda i, j: (0, i))),
            scratch_shapes=[
                pltpu.VMEM((3, t), jnp.float32),  # running 3 smallest pos sims
                pltpu.VMEM((6, t), jnp.float32),  # running 6 largest  neg sims
            ]),
        compiler_params=pltpu.CompilerParams(
            dimension_semantics=("parallel", "arbitrary"),
            vmem_limit_bytes=vmem_limit),
    )(xn, xnT, lab_cand, lab_row)

    hinge = hinge[0, :n]
    correct = correct[0, :n]
    # MarginRankingLoss(dist_an, dist_ap, y=1), reduction='mean'; prec = count
    # of rows with dist_an > dist_ap (tiny reductions, done in the wrapper).
    loss = jnp.sum(hinge) / jnp.float32(n)
    prec = jnp.sum(correct).astype(jnp.int32)
    return loss, prec


def _reference_triplet_cosine(inputs, targets, margin=0.0):
    """Pure-JAX re-implementation of the PyTorch module (parity checks)."""
    x = inputs.astype(jnp.float32)
    norm = jnp.sqrt(jnp.sum(x * x, axis=-1, keepdims=True))
    xn = x / jnp.maximum(norm, 1e-8)
    dist = 1.0 - xn @ xn.T
    same = targets[:, None] == targets[None, :]
    dist_ap = jnp.sort(jnp.where(same, dist, -1e30), axis=1)[:, -3]
    dist_an = jnp.sort(jnp.where(same, 1e30, dist), axis=1)[:, 5]
    hinge = jnp.maximum(dist_ap - dist_an + margin, 0.0)
    return jnp.mean(hinge), jnp.sum(dist_an > dist_ap).astype(jnp.int32)


if __name__ == "__main__":
    # 4 classes x 4 samples each: every row has 4 positives (incl. self) and
    # 12 negatives, so sorted()[-3] / sorted()[5] are well defined, exactly as
    # the PyTorch module requires.
    key = jax.random.PRNGKey(0)
    n_classes, per_class, d = 4, 4, 32
    n = n_classes * per_class                        # 16
    inputs = jax.random.normal(key, (n, d), dtype=jnp.float32)
    targets = jnp.repeat(jnp.arange(n_classes, dtype=jnp.int32), per_class)

    # Performance path: bf16 pre-normalized features on the MXU.
    loss, prec = triplet_loss_cosine(inputs, targets, margin=0.0)
    jax.block_until_ready((loss, prec))

    # Parity checks against the pure-JAX reference (f32 escape hatch is
    # near-exact; bf16 path checked with a loose tolerance).
    ref_loss, ref_prec = _reference_triplet_cosine(inputs, targets, margin=0.0)
    loss32, prec32 = triplet_loss_cosine(inputs, targets, margin=0.0,
                                         matmul_dtype=jnp.float32)
    assert abs(float(loss32) - float(ref_loss)) < 5e-3, (loss32, ref_loss)
    assert abs(int(prec32) - int(ref_prec)) <= 1, (prec32, ref_prec)
    assert abs(float(loss) - float(ref_loss)) < 5e-2, (loss, ref_loss)
    print("KERNEL_OK")
</pallas_src>

<mosaic_0001>
module attributes {stable_mosaic.version = 11 : i64} {
  func.func @_triplet_cosine_kernel(%arg0: i32, %arg1: i32, %arg2: memref<128x128xbf16, #tpu.memory_space<vmem>>, %arg3: memref<128x128xbf16, #tpu.memory_space<vmem>>, %arg4: memref<128x1xi32, #tpu.memory_space<vmem>>, %arg5: memref<1x128xi32, #tpu.memory_space<vmem>>, %arg6: memref<1x128xf32, #tpu.memory_space<vmem>>, %arg7: memref<1x128xf32, #tpu.memory_space<vmem>>, %arg8: memref<3x128xf32, #tpu.memory_space<vmem>>, %arg9: memref<6x128xf32, #tpu.memory_space<vmem>>) attributes {dimension_semantics = [#tpu.dimension_semantics<parallel>, #tpu.dimension_semantics<arbitrary>], iteration_bounds = array<i64: 1, 1>, scalar_prefetch = 0 : i64, scratch_operands = 2 : i64, tpu.core_type = #tpu.core_type<tc>, window_params = [{transform_indices = @transform_0, window_bounds = array<i64: 128, 128>}, {transform_indices = @transform_1, window_bounds = array<i64: 128, 128>}, {transform_indices = @transform_2, window_bounds = array<i64: 128, 1>}, {transform_indices = @transform_3, window_bounds = array<i64: 1, 128>}, {transform_indices = @transform_4, window_bounds = array<i64: 1, 128>}, {transform_indices = @transform_5, window_bounds = array<i64: 1, 128>}]} {
    %c0_i32 = arith.constant 0 : i32
    %0 = arith.cmpi eq, %arg1, %c0_i32 : i32
    %1 = arith.extui %0 : i1 to i32
    %c0_i32_0 = arith.constant 0 : i32
    %2 = arith.cmpi ne, %1, %c0_i32_0 : i32
    scf.if %2 {
      %cst_42 = arith.constant 3.000000e+38 : f32
      %101 = vector.broadcast %cst_42 : f32 to vector<3x128xf32>
      %c0_43 = arith.constant 0 : index
      %c0_44 = arith.constant 0 : index
      %102 = vector.load %arg8[%c0_43, %c0_44] : memref<3x128xf32, #tpu.memory_space<vmem>>, vector<3x128xf32>
      tpu.vector_store %arg8[%c0_43, %c0_44], %101 {strides = array<i32>} : memref<3x128xf32, #tpu.memory_space<vmem>>, vector<3x128xf32>,
      %cst_45 = arith.constant 0.000000e+00 : f32
      %103 = vector.broadcast %cst_45 : f32 to vector<6x128xf32>
      %c0_46 = arith.constant 0 : index
      %c0_47 = arith.constant 0 : index
      %104 = vector.load %arg9[%c0_46, %c0_47] : memref<6x128xf32, #tpu.memory_space<vmem>>, vector<6x128xf32>
      tpu.vector_store %arg9[%c0_46, %c0_47], %103 {strides = array<i32>} : memref<6x128xf32, #tpu.memory_space<vmem>>, vector<6x128xf32>,
    } else {
    }
    %c0 = arith.constant 0 : index
    %c0_1 = arith.constant 0 : index
    %3 = vector.load %arg2[%c0, %c0_1] : memref<128x128xbf16, #tpu.memory_space<vmem>>, vector<128x128xbf16>
    %c0_2 = arith.constant 0 : index
    %c0_3 = arith.constant 0 : index
    %4 = vector.load %arg3[%c0_2, %c0_3] : memref<128x128xbf16, #tpu.memory_space<vmem>>, vector<128x128xbf16>
    %cst = arith.constant dense<0.000000e+00> : vector<128x128xf32>
    %5 = tpu.matmul %3, %4, %cst {dimension_numbers = #tpu.dot_dimension_numbers<[1], [0], [0], [1], [0, 0, 1, 1], [], []>} : vector<128x128xbf16>, vector<128x128xbf16>, vector<128x128xf32> -> vector<128x128xf32>
    %cst_4 = arith.constant 2.000000e+00 : f32
    %6 = vector.broadcast %cst_4 : f32 to vector<128x128xf32>
    %7 = arith.addf %5, %6 : vector<128x128xf32>
    %8 = tpu.bitcast %7 : vector<128x128xf32> -> vector<128x128xi32>
    %9 = tpu.iota {dimensions = array<i32: 0>} : vector<128x128xi32>
    %c-256_i32 = arith.constant -256 : i32
    %10 = vector.broadcast %c-256_i32 : i32 to vector<128x128xi32>
    %11 = arith.andi %8, %10 : vector<128x128xi32>
    %12 = arith.ori %11, %9 : vector<128x128xi32>
    %13 = tpu.bitcast %12 : vector<128x128xi32> -> vector<128x128xf32>
    %c0_5 = arith.constant 0 : index
    %c0_6 = arith.constant 0 : index
    %14 = vector.load %arg4[%c0_5, %c0_6] : memref<128x1xi32, #tpu.memory_space<vmem>>, vector<128x1xi32>
    %c0_7 = arith.constant 0 : index
    %c0_8 = arith.constant 0 : index
    %15 = vector.load %arg5[%c0_7, %c0_8] : memref<1x128xi32, #tpu.memory_space<vmem>>, vector<1x128xi32>
    %16 = vector.broadcast %14 : vector<128x1xi32> to vector<128x128xi32>
    %17 = vector.broadcast %15 : vector<1x128xi32> to vector<128x128xi32>
    %18 = arith.cmpi eq, %16, %17 : vector<128x128xi32>
    %cst_9 = arith.constant dense<true> : vector<128x128xi1>
    %19 = arith.xori %18, %cst_9 : vector<128x128xi1>
    %c0_i32_10 = arith.constant 0 : i32
    %20 = vector.broadcast %c0_i32_10 : i32 to vector<128x1xi32>
    %21 = arith.cmpi sge, %14, %20 : vector<128x1xi32>
    %22 = vector.broadcast %21 : vector<128x1xi1> to vector<128x128xi1>
    %23 = arith.andi %19, %22 : vector<128x128xi1>
    %cst_11 = arith.constant 3.000000e+38 : f32
    %24 = vector.broadcast %cst_11 : f32 to vector<128x128xf32>
    %25 = arith.select %18, %13, %24 : vector<128x128xi1>, vector<128x128xf32>
    %cst_12 = arith.constant 0.000000e+00 : f32
    %26 = vector.broadcast %cst_12 : f32 to vector<128x128xf32>
    %27 = arith.select %23, %13, %26 : vector<128x128xi1>, vector<128x128xf32>
    %c0_13 = arith.constant 0 : index
    %c0_14 = arith.constant 0 : index
    %28 = vector.load %arg8[%c0_13, %c0_14] : memref<3x128xf32, #tpu.memory_space<vmem>>, vector<3x128xf32>
    %29 = tpu.bitcast %28 : vector<3x128xf32> -> vector<3x128xi32>
    %30 = tpu.iota {dimensions = array<i32: 0>} : vector<3x128xi32>
    %c128_i32 = arith.constant 128 : i32
    %31 = vector.broadcast %c128_i32 : i32 to vector<3x128xi32>
    %32 = arith.addi %30, %31 : vector<3x128xi32>
    %c-256_i32_15 = arith.constant -256 : i32
    %33 = vector.broadcast %c-256_i32_15 : i32 to vector<3x128xi32>
    %34 = arith.andi %29, %33 : vector<3x128xi32>
    %35 = arith.ori %34, %32 : vector<3x128xi32>
    %36 = tpu.bitcast %35 : vector<3x128xi32> -> vector<3x128xf32>
    %c0_16 = arith.constant 0 : index
    %c0_17 = arith.constant 0 : index
    %37 = vector.load %arg9[%c0_16, %c0_17] : memref<6x128xf32, #tpu.memory_space<vmem>>, vector<6x128xf32>
    %38 = tpu.bitcast %37 : vector<6x128xf32> -> vector<6x128xi32>
    %39 = tpu.iota {dimensions = array<i32: 0>} : vector<6x128xi32>
    %c128_i32_18 = arith.constant 128 : i32
    %40 = vector.broadcast %c128_i32_18 : i32 to vector<6x128xi32>
    %41 = arith.addi %39, %40 : vector<6x128xi32>
    %c-256_i32_19 = arith.constant -256 : i32
    %42 = vector.broadcast %c-256_i32_19 : i32 to vector<6x128xi32>
    %43 = arith.andi %38, %42 : vector<6x128xi32>
    %44 = arith.ori %43, %41 : vector<6x128xi32>
    %45 = tpu.bitcast %44 : vector<6x128xi32> -> vector<6x128xf32>
    %46 = tpu.concatenate %25, %36 in 0 : vector<128x128xf32>, vector<3x128xf32> -> vector<131x128xf32>
    %cst_20 = arith.constant dense<0x7F800000> : vector<128xf32>
    %47 = vector.multi_reduction <minimumf>, %46, %cst_20 [0] : vector<131x128xf32> to vector<128xf32>
    %48 = vector.shape_cast %47 : vector<128xf32> to vector<1x128xf32>
    %49 = vector.broadcast %48 : vector<1x128xf32> to vector<131x128xf32>
    %50 = arith.cmpf oeq, %46, %49 : vector<131x128xf32>
    %cst_21 = arith.constant 3.000000e+38 : f32
    %51 = vector.broadcast %cst_21 : f32 to vector<131x128xf32>
    %52 = arith.select %50, %51, %46 : vector<131x128xi1>, vector<131x128xf32>
    %cst_22 = arith.constant dense<0x7F800000> : vector<128xf32>
    %53 = vector.multi_reduction <minimumf>, %52, %cst_22 [0] : vector<131x128xf32> to vector<128xf32>
    %54 = vector.shape_cast %53 : vector<128xf32> to vector<1x128xf32>
    %55 = vector.broadcast %54 : vector<1x128xf32> to vector<131x128xf32>
    %56 = arith.cmpf oeq, %52, %55 : vector<131x128xf32>
    %cst_23 = arith.constant 3.000000e+38 : f32
    %57 = vector.broadcast %cst_23 : f32 to vector<131x128xf32>
    %58 = arith.select %56, %57, %52 : vector<131x128xi1>, vector<131x128xf32>
    %cst_24 = arith.constant dense<0x7F800000> : vector<128xf32>
    %59 = vector.multi_reduction <minimumf>, %58, %cst_24 [0] : vector<131x128xf32> to vector<128xf32>
    %60 = vector.shape_cast %59 : vector<128xf32> to vector<1x128xf32>
    %61 = tpu.concatenate %48, %54, %60 in 0 : vector<1x128xf32>, vector<1x128xf32>, vector<1x128xf32> -> vector<3x128xf32>
    %c0_25 = arith.constant 0 : index
    %c0_26 = arith.constant 0 : index
    %62 = vector.load %arg8[%c0_25, %c0_26] : memref<3x128xf32, #tpu.memory_space<vmem>>, vector<3x128xf32>
    tpu.vector_store %arg8[%c0_25, %c0_26], %61 {strides = array<i32>} : memref<3x128xf32, #tpu.memory_space<vmem>>, vector<3x128xf32>,
    %63 = tpu.concatenate %27, %45 in 0 : vector<128x128xf32>, vector<6x128xf32> -> vector<134x128xf32>
    %cst_27 = arith.constant dense<0xFF800000> : vector<128xf32>
    %64 = vector.multi_reduction <maximumf>, %63, %cst_27 [0] : vector<134x128xf32> to vector<128xf32>
    %65 = vector.shape_cast %64 : vector<128xf32> to vector<1x128xf32>
    %66 = vector.broadcast %65 : vector<1x128xf32> to vector<134x128xf32>
    %67 = arith.cmpf oeq, %63, %66 : vector<134x128xf32>
    %cst_28 = arith.constant 0.000000e+00 : f32
    %68 = vector.broadcast %cst_28 : f32 to vector<134x128xf32>
    %69 = arith.select %67, %68, %63 : vector<134x128xi1>, vector<134x128xf32>
    %cst_29 = arith.constant dense<0xFF800000> : vector<128xf32>
    %70 = vector.multi_reduction <maximumf>, %69, %cst_29 [0] : vector<134x128xf32> to vector<128xf32>
    %71 = vector.shape_cast %70 : vector<128xf32> to vector<1x128xf32>
    %72 = vector.broadcast %71 : vector<1x128xf32> to vector<134x128xf32>
    %73 = arith.cmpf oeq, %69, %72 : vector<134x128xf32>
    %cst_30 = arith.constant 0.000000e+00 : f32
    %74 = vector.broadcast %cst_30 : f32 to vector<134x128xf32>
    %75 = arith.select %73, %74, %69 : vector<134x128xi1>, vector<134x128xf32>
    %cst_31 = arith.constant dense<0xFF800000> : vector<128xf32>
    %76 = vector.multi_reduction <maximumf>, %75, %cst_31 [0] : vector<134x128xf32> to vector<128xf32>
    %77 = vector.shape_cast %76 : vector<128xf32> to vector<1x128xf32>
    %78 = vector.broadcast %77 : vector<1x128xf32> to vector<134x128xf32>
    %79 = arith.cmpf oeq, %75, %78 : vector<134x128xf32>
    %cst_32 = arith.constant 0.000000e+00 : f32
    %80 = vector.broadcast %cst_32 : f32 to vector<134x128xf32>
    %81 = arith.select %79, %80, %75 : vector<134x128xi1>, vector<134x128xf32>
    %cst_33 = arith.constant dense<0xFF800000> : vector<128xf32>
    %82 = vector.multi_reduction <maximumf>, %81, %cst_33 [0] : vector<134x128xf32> to vector<128xf32>
    %83 = vector.shape_cast %82 : vector<128xf32> to vector<1x128xf32>
    %84 = vector.broadcast %83 : vector<1x128xf32> to vector<134x128xf32>
    %85 = arith.cmpf oeq, %81, %84 : vector<134x128xf32>
    %cst_34 = arith.constant 0.000000e+00 : f32
    %86 = vector.broadcast %cst_34 : f32 to vector<134x128xf32>
    %87 = arith.select %85, %86, %81 : vector<134x128xi1>, vector<134x128xf32>
    %cst_35 = arith.constant dense<0xFF800000> : vector<128xf32>
    %88 = vector.multi_reduction <maximumf>, %87, %cst_35 [0] : vector<134x128xf32> to vector<128xf32>
    %89 = vector.shape_cast %88 : vector<128xf32> to vector<1x128xf32>
    %90 = vector.broadcast %89 : vector<1x128xf32> to vector<134x128xf32>
    %91 = arith.cmpf oeq, %87, %90 : vector<134x128xf32>
    %cst_36 = arith.constant 0.000000e+00 : f32
    %92 = vector.broadcast %cst_36 : f32 to vector<134x128xf32>
    %93 = arith.select %91, %92, %87 : vector<134x128xi1>, vector<134x128xf32>
    %cst_37 = arith.constant dense<0xFF800000> : vector<128xf32>
    %94 = vector.multi_reduction <maximumf>, %93, %cst_37 [0] : vector<134x128xf32> to vector<128xf32>
    %95 = vector.shape_cast %94 : vector<128xf32> to vector<1x128xf32>
    %96 = tpu.concatenate %65, %71, %77, %83, %89, %95 in 0 : vector<1x128xf32>, vector<1x128xf32>, vector<1x128xf32>, vector<1x128xf32>, vector<1x128xf32>, vector<1x128xf32> -> vector<6x128xf32>
    %c0_38 = arith.constant 0 : index
    %c0_39 = arith.constant 0 : index
    %97 = vector.load %arg9[%c0_38, %c0_39] : memref<6x128xf32, #tpu.memory_space<vmem>>, vector<6x128xf32>
    tpu.vector_store %arg9[%c0_38, %c0_39], %96 {strides = array<i32>} : memref<6x128xf32, #tpu.memory_space<vmem>>, vector<6x128xf32>,
    %c0_i32_40 = arith.constant 0 : i32
    %98 = arith.cmpi eq, %arg1, %c0_i32_40 : i32
    %99 = arith.extui %98 : i1 to i32
    %c0_i32_41 = arith.constant 0 : i32
    %100 = arith.cmpi ne, %99, %c0_i32_41 : i32
    scf.if %100 {
      %c2 = arith.constant 2 : index
      %c0_42 = arith.constant 0 : index
      %101 = vector.load %arg8[%c2, %c0_42] : memref<3x128xf32, #tpu.memory_space<vmem>>, vector<1x128xf32>
      %cst_43 = arith.constant 2.000000e+00 : f32
      %102 = vector.broadcast %cst_43 : f32 to vector<1x128xf32>
      %103 = arith.subf %101, %102 : vector<1x128xf32>
      %c5 = arith.constant 5 : index
      %c0_44 = arith.constant 0 : index
      %104 = vector.load %arg9[%c5, %c0_44] : memref<6x128xf32, #tpu.memory_space<vmem>>, vector<1x128xf32>
      %cst_45 = arith.constant 2.000000e+00 : f32
      %105 = vector.broadcast %cst_45 : f32 to vector<1x128xf32>
      %106 = arith.subf %104, %105 : vector<1x128xf32>
      %107 = arith.subf %106, %103 : vector<1x128xf32>
      %cst_46 = arith.constant 0.000000e+00 : f32
      %108 = vector.broadcast %cst_46 : f32 to vector<1x128xf32>
      %109 = arith.addf %107, %108 : vector<1x128xf32>
      %cst_47 = arith.constant 0.000000e+00 : f32
      %110 = vector.broadcast %cst_47 : f32 to vector<1x128xf32>
      %111 = arith.maximumf %109, %110 : vector<1x128xf32>
      %c0_48 = arith.constant 0 : index
      %c0_49 = arith.constant 0 : index
      %112 = vector.load %arg6[%c0_48, %c0_49] : memref<1x128xf32, #tpu.memory_space<vmem>>, vector<1x128xf32>
      tpu.vector_store %arg6[%c0_48, %c0_49], %111 {strides = array<i32>} : memref<1x128xf32, #tpu.memory_space<vmem>>, vector<1x128xf32>,
      %113 = arith.cmpf ogt, %103, %106 : vector<1x128xf32>
      %114 = arith.extui %113 : vector<1x128xi1> to vector<1x128xi32>
      %115 = arith.sitofp %114 : vector<1x128xi32> to vector<1x128xf32>
      %c0_50 = arith.constant 0 : index
      %c0_51 = arith.constant 0 : index
      %116 = vector.load %arg7[%c0_50, %c0_51] : memref<1x128xf32, #tpu.memory_space<vmem>>, vector<1x128xf32>
      tpu.vector_store %arg7[%c0_50, %c0_51], %115 {strides = array<i32>} : memref<1x128xf32, #tpu.memory_space<vmem>>, vector<1x128xf32>,
    } else {
    }
    return
  }
  func.func @transform_0(%arg0: i32, %arg1: i32) -> (i32, i32) {
    %c0_i32 = arith.constant 0 : i32
    %c0_i32_0 = arith.constant 0 : i32
    return %arg1, %c0_i32 : i32, i32
  }
  func.func @transform_1(%arg0: i32, %arg1: i32) -> (i32, i32) {
    %c0_i32 = arith.constant 0 : i32
    %c0_i32_0 = arith.constant 0 : i32
    return %c0_i32, %arg0 : i32, i32
  }
  func.func @transform_2(%arg0: i32, %arg1: i32) -> (i32, i32) {
    %c0_i32 = arith.constant 0 : i32
    %c0_i32_0 = arith.constant 0 : i32
    return %arg1, %c0_i32 : i32, i32
  }
  func.func @transform_3(%arg0: i32, %arg1: i32) -> (i32, i32) {
    %c0_i32 = arith.constant 0 : i32
    %c0_i32_0 = arith.constant 0 : i32
    return %c0_i32, %arg0 : i32, i32
  }
  func.func @transform_4(%arg0: i32, %arg1: i32) -> (i32, i32) {
    %c0_i32 = arith.constant 0 : i32
    %c0_i32_0 = arith.constant 0 : i32
    return %c0_i32, %arg0 : i32, i32
  }
  func.func @transform_5(%arg0: i32, %arg1: i32) -> (i32, i32) {
    %c0_i32 = arith.constant 0 : i32
    %c0_i32_0 = arith.constant 0 : i32
    return %c0_i32, %arg0 : i32, i32
  }
}

</mosaic_0001>

<llo_original>
// kernel: tpu_custom_call.1
$region0: #{tpu_custom_call.1}
  #allocation0 [shape = 'u32[]', space=smem, size = 0x4, offset = 0x4, fixed_abs, tag = 'smem constant byte address 0x4 - core index']
  #allocation1 [shape = 'u32[144,128]{1,0:T(1,128)}', space=vmem, size = 0x12000, scoped, tag = 'internal scratch']
  #allocation2 [shape = 'f32[3,128]{1,0:T(4,128)}', space=vmem, size = 0x800, scoped, tag = 'scratch operand']
  #allocation3 [shape = 'f32[6,128]{1,0:T(8,128)}', space=vmem, size = 0x1000, scoped, tag = 'scratch operand']
  %s0 = inlined_call_operand.vmem [shape: bf16[128,128], index: 0, kind: input, shape index: {}]
  %s1 = inlined_call_operand.vmem [shape: bf16[128,128], index: 1, kind: input, shape index: {}]
  %s2 = inlined_call_operand.vmem [shape: s32[128,1], index: 2, kind: input, shape index: {}]
  %s3 = inlined_call_operand.vmem [shape: s32[1,128], index: 3, kind: input, shape index: {}]
  %s4 = inlined_call_operand.hbm [shape: f32[1,128], index: 4, kind: output, shape index: {0}]
  %s5 = inlined_call_operand.hbm [shape: f32[1,128], index: 5, kind: output, shape index: {1}]
  %6 = xla_tuple %s4, %s5
  %s7 = sld [smem:[#allocation0]]
  $region42: #{tpu_custom_call.1} parent=0
    _
  %s9 = ssub.s32 1, %s7
  %s10 = scalar_select 0, %s9, %s7
  $region1: #{tpu_custom_call.1} parent=0
    #allocation4 [shape = 'u8[512]{0}', space=vmem, size = 0x400, scoped, tag = 'output window, operand 0, single buffered']
    #allocation5 [shape = 's32[1]{0}', space=sflag, size = 0x4, scoped, tag = 'scoped memory for tpu_custom_call.1']
    #allocation6 [shape = 'u8[512]{0}', space=vmem, size = 0x400, scoped, tag = 'output window, operand 1, single buffered']
    #allocation7 [shape = 's32[1]{0}', space=sflag, size = 0x4, scoped, tag = 'scoped memory for tpu_custom_call.1']
    %11 = vsyncpa [#allocation5], 0
    %12 = vsyncpa [#allocation7], 0
    // Predicated region
    $region2: #{tpu_custom_call.1} parent=1 // pred_check
      _
    $region3: #{tpu_custom_call.1} parent=1 // pred_check_branch
      %14 = sbr.rel (0) target = $region5
    $region4: #{tpu_custom_call.1} parent=1 // pred_region
      _
    $region5: #{tpu_custom_call.1} parent=1 // pred_fallthru
      _
    // Predicated region
    $region6: #{tpu_custom_call.1} parent=1 // pred_check
      _
    $region7: #{tpu_custom_call.1} parent=1 // pred_check_branch
      %16 = sbr.rel (0) target = $region9
    $region8: #{tpu_custom_call.1} parent=1 // pred_region
      _
    $region9: #{tpu_custom_call.1} parent=1 // pred_fallthru
      _
    // Predicated region
    $region10: #{tpu_custom_call.1} parent=1 // pred_check
      _
    $region11: #{tpu_custom_call.1} parent=1 // pred_check_branch
      %18 = sbr.rel (0) target = $region13
    $region12: #{tpu_custom_call.1} parent=1 // pred_region
      _
    $region13: #{tpu_custom_call.1} parent=1 // pred_fallthru
      _
    // Predicated region
    $region14: #{tpu_custom_call.1} parent=1 // pred_check
      _
    $region15: #{tpu_custom_call.1} parent=1 // pred_check_branch
      %20 = sbr.rel (0) target = $region17
    $region16: #{tpu_custom_call.1} parent=1 // pred_region
      _
    $region17: #{tpu_custom_call.1} parent=1 // pred_fallthru
      _
    %p22 = scmp.eq.s32.totalorder 0, 0
    // Predicated region
    $region18: #{tpu_custom_call.1} parent=1 // pred_check
      %p23 = pneg %p22
    $region19: #{tpu_custom_call.1} parent=1 // pred_check_branch
      %25 = sbr.rel (%p23) target = $region21
    $region20: #{tpu_custom_call.1} parent=1 // pred_region
      %26 = vst [vmem:[#allocation2] sm:$0x7] 3e+38
      %27 = vst [vmem:[#allocation3] sm:$0x3f] 0.0
    $region21: #{tpu_custom_call.1} parent=1 // pred_fallthru
      _
    %v28 = vld [vmem:[%s0] sm:$0xf]
    %v29 = vld [vmem:[%s0 + $0x4] sm:$0xf]
    %v30 = vld [vmem:[%s0 + $0x8] sm:$0xf]
    %v31 = vld [vmem:[%s0 + $0xc] sm:$0xf]
    %v32 = vld [vmem:[%s0 + $0x10] sm:$0xf]
    %v33 = vld [vmem:[%s0 + $0x14] sm:$0xf]
    %v34 = vld [vmem:[%s0 + $0x18] sm:$0xf]
    %v35 = vld [vmem:[%s0 + $0x1c] sm:$0xf]
    %v36 = vld [vmem:[%s0 + $0x20] sm:$0xf]
    %v37 = vld [vmem:[%s0 + $0x24] sm:$0xf]
    %v38 = vld [vmem:[%s0 + $0x28] sm:$0xf]
    %v39 = vld [vmem:[%s0 + $0x2c] sm:$0xf]
    %v40 = vld [vmem:[%s0 + $0x30] sm:$0xf]
    %v41 = vld [vmem:[%s0 + $0x34] sm:$0xf]
    %v42 = vld [vmem:[%s0 + $0x38] sm:$0xf]
    %v43 = vld [vmem:[%s0 + $0x3c] sm:$0xf]
    %v44 = vld [vmem:[%s1] sm:$0xf]
    %v45 = vld [vmem:[%s1 + $0x4] sm:$0xf]
    %v46 = vld [vmem:[%s1 + $0x8] sm:$0xf]
    %v47 = vld [vmem:[%s1 + $0xc] sm:$0xf]
    %v48 = vld [vmem:[%s1 + $0x10] sm:$0xf]
    %v49 = vld [vmem:[%s1 + $0x14] sm:$0xf]
    %v50 = vld [vmem:[%s1 + $0x18] sm:$0xf]
    %v51 = vld [vmem:[%s1 + $0x1c] sm:$0xf]
    %v52 = vld [vmem:[%s1 + $0x20] sm:$0xf]
    %v53 = vld [vmem:[%s1 + $0x24] sm:$0xf]
    %v54 = vld [vmem:[%s1 + $0x28] sm:$0xf]
    %v55 = vld [vmem:[%s1 + $0x2c] sm:$0xf]
    %v56 = vld [vmem:[%s1 + $0x30] sm:$0xf]
    %v57 = vld [vmem:[%s1 + $0x34] sm:$0xf]
    %v58 = vld [vmem:[%s1 + $0x38] sm:$0xf]
    %v59 = vld [vmem:[%s1 + $0x3c] sm:$0xf]
    %v76 = vunpack.c.l.b16 %v28
    %v77 = vunpack.c.l.b16 %v29
    %v78 = vunpack.c.l.b16 %v30
    %v79 = vunpack.c.l.b16 %v31
    %v80 = vunpack.c.l.b16 %v32
    %v81 = vunpack.c.l.b16 %v33
    %v82 = vunpack.c.l.b16 %v34
    %v83 = vunpack.c.l.b16 %v35
    %v84 = vunpack.c.l.b16 %v36
    %v85 = vunpack.c.l.b16 %v37
    %v86 = vunpack.c.l.b16 %v38
    %v87 = vunpack.c.l.b16 %v39
    %v88 = vunpack.c.l.b16 %v40
    %v89 = vunpack.c.l.b16 %v41
    %v90 = vunpack.c.l.b16 %v42
    %v91 = vunpack.c.l.b16 %v43
    %v92 = vpack.c.b16 %v77, %v76
    %v93 = vpack.c.b16 %v79, %v78
    %v94 = vpack.c.b16 %v81, %v80
    %v95 = vpack.c.b16 %v83, %v82
    %v96 = vpack.c.b16 %v85, %v84
    %v97 = vpack.c.b16 %v87, %v86
    %v98 = vpack.c.b16 %v89, %v88
    %v99 = vpack.c.b16 %v91, %v90
    %v124 = vunpack.c.l.b16 %v44
    %v125 = vunpack.c.l.b16 %v45
    %v126 = vunpack.c.l.b16 %v46
    %v127 = vunpack.c.l.b16 %v47
    %v128 = vunpack.c.l.b16 %v48
    %v129 = vunpack.c.l.b16 %v49
    %v130 = vunpack.c.l.b16 %v50
    %v131 = vunpack.c.l.b16 %v51
    %v132 = vunpack.c.l.b16 %v52
    %v133 = vunpack.c.l.b16 %v53
    %v134 = vunpack.c.l.b16 %v54
    %v135 = vunpack.c.l.b16 %v55
    %v136 = vunpack.c.l.b16 %v56
    %v137 = vunpack.c.l.b16 %v57
    %v138 = vunpack.c.l.b16 %v58
    %v139 = vunpack.c.l.b16 %v59
    %v140 = vpack.c.b16 %v125, %v124
    %v141 = vpack.c.b16 %v127, %v126
    %v142 = vpack.c.b16 %v129, %v128
    %v143 = vpack.c.b16 %v131, %v130
    %v144 = vpack.c.b16 %v133, %v132
    %v145 = vpack.c.b16 %v135, %v134
    %v146 = vpack.c.b16 %v137, %v136
    %v147 = vpack.c.b16 %v139, %v138
    %156 = vmatprep.subr.bf16.mxu0 0
    %157 = vmatpush1.bf16.msra.mxu0 %v140
    %158 = vmatprep.subr.bf16.mxu0 0
    %159 = vmatpush1.bf16.msra.mxu0 %v141
    %160 = vmatprep.subr.bf16.mxu0 0
    %161 = vmatpush1.bf16.msra.mxu0 %v142
    %162 = vmatprep.subr.bf16.mxu0 0
    %163 = vmatpush1.bf16.msra.mxu0 %v143
    %164 = vmatprep.subr.bf16.mxu0 0
    %165 = vmatpush1.bf16.msra.mxu0 %v144
    %166 = vmatprep.subr.bf16.mxu0 0
    %167 = vmatpush1.bf16.msra.mxu0 %v145
    %168 = vmatprep.subr.bf16.mxu0 0
    %169 = vmatpush1.bf16.msra.mxu0 %v146
    %170 = vmatprep.subr.bf16.mxu0 0
    %171 = vmatpush1.bf16.msra.mxu0 %v147
    %172 = vmatprep.subr.bf16.mxu0 0
    %173 = vmatpush1.bf16.msra.mxu0 0
    %174 = vmatprep.subr.bf16.mxu0 0
    %175 = vmatpush1.bf16.msra.mxu0 0
    %176 = vmatprep.subr.bf16.mxu0 0
    %177 = vmatpush1.bf16.msra.mxu0 0
    %178 = vmatprep.subr.bf16.mxu0 0
    %179 = vmatpush1.bf16.msra.mxu0 0
    %180 = vmatprep.subr.bf16.mxu0 0
    %181 = vmatpush1.bf16.msra.mxu0 0
    %182 = vmatprep.subr.bf16.mxu0 0
    %183 = vmatpush1.bf16.msra.mxu0 0
    %184 = vmatprep.subr.bf16.mxu0 0
    %185 = vmatpush1.bf16.msra.mxu0 0
    %186 = vmatprep.subr.bf16.mxu0 0
    %187 = vmatpush1.bf16.msra.mxu0 0
    %188 = vmatprep.mubr.bf16.mxu0 0
    %189 = vmatmul.mubr.bf16.gmra.mrb[0].mxu0 %v92
    %v190 = vpop.f32.mrb[0].mxu0
    %v191 = vadd.f32 2.0, %v190
    %v192 = vpop.f32.mrb[0].mxu0
    %v193 = vpop.f32.mrb[0].mxu0
    %v194 = vadd.f32 2.0, %v193
    %v195 = vpop.f32.mrb[0].mxu0
    %196 = vmatprep.mubr.bf16.mxu0 0
    %197 = vmatmul.mubr.bf16.gmra.mrb[0].mxu0 %v93
    %v198 = vpop.f32.mrb[0].mxu0
    %v199 = vadd.f32 2.0, %v198
    %v200 = vpop.f32.mrb[0].mxu0
    %v201 = vpop.f32.mrb[0].mxu0
    %v202 = vadd.f32 2.0, %v201
    %v203 = vpop.f32.mrb[0].mxu0
    %204 = vmatprep.mubr.bf16.mxu0 0
    %205 = vmatmul.mubr.bf16.gmra.mrb[0].mxu0 %v94
    %v206 = vpop.f32.mrb[0].mxu0
    %v207 = vadd.f32 2.0, %v206
    %v208 = vpop.f32.mrb[0].mxu0
    %v209 = vpop.f32.mrb[0].mxu0
    %v210 = vadd.f32 2.0, %v209
    %v211 = vpop.f32.mrb[0].mxu0
    %212 = vmatprep.mubr.bf16.mxu0 0
    %213 = vmatmul.mubr.bf16.gmra.mrb[0].mxu0 %v95
    %v214 = vpop.f32.mrb[0].mxu0
    %v215 = vadd.f32 2.0, %v214
    %v216 = vpop.f32.mrb[0].mxu0
    %v217 = vpop.f32.mrb[0].mxu0
    %v218 = vadd.f32 2.0, %v217
    %v219 = vpop.f32.mrb[0].mxu0
    %220 = vmatprep.mubr.bf16.mxu0 0
    %221 = vmatmul.mubr.bf16.gmra.mrb[0].mxu0 %v96
    %v222 = vpop.f32.mrb[0].mxu0
    %v223 = vadd.f32 2.0, %v222
    %v224 = vpop.f32.mrb[0].mxu0
    %v225 = vpop.f32.mrb[0].mxu0
    %v226 = vadd.f32 2.0, %v225
    %v227 = vpop.f32.mrb[0].mxu0
    %228 = vmatprep.mubr.bf16.mxu0 0
    %229 = vmatmul.mubr.bf16.gmra.mrb[0].mxu0 %v97
    %v230 = vpop.f32.mrb[0].mxu0
    %v231 = vadd.f32 2.0, %v230
    %v232 = vpop.f32.mrb[0].mxu0
    %v233 = vpop.f32.mrb[0].mxu0
    %v234 = vadd.f32 2.0, %v233
    %v235 = vpop.f32.mrb[0].mxu0
    %236 = vmatprep.mubr.bf16.mxu0 0
    %237 = vmatmul.mubr.bf16.gmra.mrb[0].mxu0 %v98
    %v238 = vpop.f32.mrb[0].mxu0
    %v239 = vadd.f32 2.0, %v238
    %v240 = vpop.f32.mrb[0].mxu0
    %v241 = vpop.f32.mrb[0].mxu0
    %v242 = vadd.f32 2.0, %v241
    %v243 = vpop.f32.mrb[0].mxu0
    %244 = vmatprep.mubr.bf16.mxu0 0
    %245 = vmatmul.mubr.bf16.gmra.mrb[0].mxu0 %v99
    %v246 = vpop.f32.mrb[0].mxu0
    %v247 = vadd.f32 2.0, %v246
    %v248 = vpop.f32.mrb[0].mxu0
    %v249 = vpop.f32.mrb[0].mxu0
    %v250 = vadd.f32 2.0, %v249
    %v251 = vpop.f32.mrb[0].mxu0
    %252 = vdwg.mxu0
    %v269 = vlaneseq
    %v270 = vshrl.u32 %v269, 7
    %v271 = vadd.s32 %v270, 8
    %v272 = vadd.s32 %v270, 16
    %v273 = vadd.s32 %v270, 24
    %v274 = vadd.s32 %v270, 32
    %v275 = vadd.s32 %v270, 40
    %v276 = vadd.s32 %v270, 48
    %v277 = vadd.s32 %v270, 56
    %v278 = vadd.s32 %v270, 64
    %v279 = vadd.s32 %v270, 72
    %v280 = vadd.s32 %v270, 80
    %v281 = vadd.s32 %v270, 88
    %v282 = vadd.s32 %v270, 96
    %v283 = vadd.s32 %v270, 104
    %v284 = vadd.s32 %v270, 112
    %v285 = vadd.s32 %v270, 120
    %v286 = vand.u32 %v191, 4294967040
    %v287 = vand.u32 %v194, 4294967040
    %v288 = vand.u32 %v199, 4294967040
    %v289 = vand.u32 %v202, 4294967040
    %v290 = vand.u32 %v207, 4294967040
    %v291 = vand.u32 %v210, 4294967040
    %v292 = vand.u32 %v215, 4294967040
    %v293 = vand.u32 %v218, 4294967040
    %v294 = vand.u32 %v223, 4294967040
    %v295 = vand.u32 %v226, 4294967040
    %v296 = vand.u32 %v231, 4294967040
    %v297 = vand.u32 %v234, 4294967040
    %v298 = vand.u32 %v239, 4294967040
    %v299 = vand.u32 %v242, 4294967040
    %v300 = vand.u32 %v247, 4294967040
    %v301 = vand.u32 %v250, 4294967040
    %v302 = vor.u32 %v286, %v270
    %v303 = vor.u32 %v287, %v271
    %v304 = vor.u32 %v288, %v272
    %v305 = vor.u32 %v289, %v273
    %v306 = vor.u32 %v290, %v274
    %v307 = vor.u32 %v291, %v275
    %v308 = vor.u32 %v292, %v276
    %v309 = vor.u32 %v293, %v277
    %v310 = vor.u32 %v294, %v278
    %v311 = vor.u32 %v295, %v279
    %v312 = vor.u32 %v296, %v280
    %v313 = vor.u32 %v297, %v281
    %v314 = vor.u32 %v298, %v282
    %v315 = vor.u32 %v299, %v283
    %v316 = vor.u32 %v300, %v284
    %v317 = vor.u32 %v301, %v285
    %v334 = vld [vmem:[%s2] sm:$0xff]
    %v335 = vld [vmem:[%s2 + $0x8] sm:$0xff]
    %v336 = vld [vmem:[%s2 + $0x10] sm:$0xff]
    %v337 = vld [vmem:[%s2 + $0x18] sm:$0xff]
    %v338 = vld [vmem:[%s2 + $0x20] sm:$0xff]
    %v339 = vld [vmem:[%s2 + $0x28] sm:$0xff]
    %v340 = vld [vmem:[%s2 + $0x30] sm:$0xff]
    %v341 = vld [vmem:[%s2 + $0x38] sm:$0xff]
    %v342 = vld [vmem:[%s2 + $0x40] sm:$0xff]
    %v343 = vld [vmem:[%s2 + $0x48] sm:$0xff]
    %v344 = vld [vmem:[%s2 + $0x50] sm:$0xff]
    %v345 = vld [vmem:[%s2 + $0x58] sm:$0xff]
    %v346 = vld [vmem:[%s2 + $0x60] sm:$0xff]
    %v347 = vld [vmem:[%s2 + $0x68] sm:$0xff]
    %v348 = vld [vmem:[%s2 + $0x70] sm:$0xff]
    %v349 = vld [vmem:[%s2 + $0x78] sm:$0xff]
    %v350 = vld [vmem:[%s3] sm:$0x1]
    %351 = vset.pattern.permute.xlu0 0
    %352 = vperm.xlu0 %351, %v334
    %v353 = vpop.permute.xlu0 %352
    %354 = vset.pattern.permute.xlu0 0
    %355 = vperm.xlu0 %354, %v335
    %v356 = vpop.permute.xlu0 %355
    %357 = vset.pattern.permute.xlu0 0
    %358 = vperm.xlu0 %357, %v336
    %v359 = vpop.permute.xlu0 %358
    %360 = vset.pattern.permute.xlu0 0
    %361 = vperm.xlu0 %360, %v337
    %v362 = vpop.permute.xlu0 %361
    %363 = vset.pattern.permute.xlu0 0
    %364 = vperm.xlu0 %363, %v338
    %v365 = vpop.permute.xlu0 %364
    %366 = vset.pattern.permute.xlu0 0
    %367 = vperm.xlu0 %366, %v339
    %v368 = vpop.permute.xlu0 %367
    %369 = vset.pattern.permute.xlu0 0
    %370 = vperm.xlu0 %369, %v340
    %v371 = vpop.permute.xlu0 %370
    %372 = vset.pattern.permute.xlu0 0
    %373 = vperm.xlu0 %372, %v341
    %v374 = vpop.permute.xlu0 %373
    %375 = vset.pattern.permute.xlu0 0
    %376 = vperm.xlu0 %375, %v342
    %v377 = vpop.permute.xlu0 %376
    %378 = vset.pattern.permute.xlu0 0
    %379 = vperm.xlu0 %378, %v343
    %v380 = vpop.permute.xlu0 %379
    %381 = vset.pattern.permute.xlu0 0
    %382 = vperm.xlu0 %381, %v344
    %v383 = vpop.permute.xlu0 %382
    %384 = vset.pattern.permute.xlu0 0
    %385 = vperm.xlu0 %384, %v345
    %v386 = vpop.permute.xlu0 %385
    %387 = vset.pattern.permute.xlu0 0
    %388 = vperm.xlu0 %387, %v346
    %v389 = vpop.permute.xlu0 %388
    %390 = vset.pattern.permute.xlu0 0
    %391 = vperm.xlu0 %390, %v347
    %v392 = vpop.permute.xlu0 %391
    %393 = vset.pattern.permute.xlu0 0
    %394 = vperm.xlu0 %393, %v348
    %v395 = vpop.permute.xlu0 %394
    %396 = vset.pattern.permute.xlu0 0
    %397 = vperm.xlu0 %396, %v349
    %v398 = vpop.permute.xlu0 %397
    %v399 = vlaneseq
    %v400 = vshrl.u32 %v399, 7
    %v401 = vsub.s32 0, %v400
    %v402 = vrot.slane %v350, %v401
    %vm403 = vcmp.eq.s32.totalorder %v353, %v402
    %vm404 = vcmp.eq.s32.totalorder %v356, %v402
    %vm405 = vcmp.eq.s32.totalorder %v359, %v402
    %vm406 = vcmp.eq.s32.totalorder %v362, %v402
    %vm407 = vcmp.eq.s32.totalorder %v365, %v402
    %vm408 = vcmp.eq.s32.totalorder %v368, %v402
    %vm409 = vcmp.eq.s32.totalorder %v371, %v402
    %vm410 = vcmp.eq.s32.totalorder %v374, %v402
    %vm411 = vcmp.eq.s32.totalorder %v377, %v402
    %vm412 = vcmp.eq.s32.totalorder %v380, %v402
    %vm413 = vcmp.eq.s32.totalorder %v383, %v402
    %vm414 = vcmp.eq.s32.totalorder %v386, %v402
    %vm415 = vcmp.eq.s32.totalorder %v389, %v402
    %vm416 = vcmp.eq.s32.totalorder %v392, %v402
    %vm417 = vcmp.eq.s32.totalorder %v395, %v402
    %vm418 = vcmp.eq.s32.totalorder %v398, %v402
    %vm419 = vmxor %vm403, 1
    %vm420 = vmxor %vm404, 1
    %vm421 = vmxor %vm405, 1
    %vm422 = vmxor %vm406, 1
    %vm423 = vmxor %vm407, 1
    %vm424 = vmxor %vm408, 1
    %vm425 = vmxor %vm409, 1
    %vm426 = vmxor %vm410, 1
    %vm427 = vmxor %vm411, 1
    %vm428 = vmxor %vm412, 1
    %vm429 = vmxor %vm413, 1
    %vm430 = vmxor %vm414, 1
    %vm431 = vmxor %vm415, 1
    %vm432 = vmxor %vm416, 1
    %vm433 = vmxor %vm417, 1
    %vm434 = vmxor %vm418, 1
    %vm435 = vcmp.ge.s32.totalorder %v334, 0
    %vm436 = vcmp.ge.s32.totalorder %v335, 0
    %vm437 = vcmp.ge.s32.totalorder %v336, 0
    %vm438 = vcmp.ge.s32.totalorder %v337, 0
    %vm439 = vcmp.ge.s32.totalorder %v338, 0
    %vm440 = vcmp.ge.s32.totalorder %v339, 0
    %vm441 = vcmp.ge.s32.totalorder %v340, 0
    %vm442 = vcmp.ge.s32.totalorder %v341, 0
    %vm443 = vcmp.ge.s32.totalorder %v342, 0
    %vm444 = vcmp.ge.s32.totalorder %v343, 0
    %vm445 = vcmp.ge.s32.totalorder %v344, 0
    %vm446 = vcmp.ge.s32.totalorder %v345, 0
    %vm447 = vcmp.ge.s32.totalorder %v346, 0
    %vm448 = vcmp.ge.s32.totalorder %v347, 0
    %vm449 = vcmp.ge.s32.totalorder %v348, 0
    %vm450 = vcmp.ge.s32.totalorder %v349, 0
    %v451 = vsel %vm435, 1, 0
    %v452 = vsel %vm436, 1, 0
    %v453 = vsel %vm437, 1, 0
    %v454 = vsel %vm438, 1, 0
    %v455 = vsel %vm439, 1, 0
    %v456 = vsel %vm440, 1, 0
    %v457 = vsel %vm441, 1, 0
    %v458 = vsel %vm442, 1, 0
    %v459 = vsel %vm443, 1, 0
    %v460 = vsel %vm444, 1, 0
    %v461 = vsel %vm445, 1, 0
    %v462 = vsel %vm446, 1, 0
    %v463 = vsel %vm447, 1, 0
    %v464 = vsel %vm448, 1, 0
    %v465 = vsel %vm449, 1, 0
    %v466 = vsel %vm450, 1, 0
    %467 = vset.pattern.permute.xlu0 0
    %468 = vperm.xlu0 %467, %v451
    %v469 = vpop.permute.xlu0 %468
    %470 = vset.pattern.permute.xlu0 0
    %471 = vperm.xlu0 %470, %v452
    %v472 = vpop.permute.xlu0 %471
    %473 = vset.pattern.permute.xlu0 0
    %474 = vperm.xlu0 %473, %v453
    %v475 = vpop.permute.xlu0 %474
    %476 = vset.pattern.permute.xlu0 0
    %477 = vperm.xlu0 %476, %v454
    %v478 = vpop.permute.xlu0 %477
    %479 = vset.pattern.permute.xlu0 0
    %480 = vperm.xlu0 %479, %v455
    %v481 = vpop.permute.xlu0 %480
    %482 = vset.pattern.permute.xlu0 0
    %483 = vperm.xlu0 %482, %v456
    %v484 = vpop.permute.xlu0 %483
    %485 = vset.pattern.permute.xlu0 0
    %486 = vperm.xlu0 %485, %v457
    %v487 = vpop.permute.xlu0 %486
    %488 = vset.pattern.permute.xlu0 0
    %489 = vperm.xlu0 %488, %v458
    %v490 = vpop.permute.xlu0 %489
    %491 = vset.pattern.permute.xlu0 0
    %492 = vperm.xlu0 %491, %v459
    %v493 = vpop.permute.xlu0 %492
    %494 = vset.pattern.permute.xlu0 0
    %495 = vperm.xlu0 %494, %v460
    %v496 = vpop.permute.xlu0 %495
    %497 = vset.pattern.permute.xlu0 0
    %498 = vperm.xlu0 %497, %v461
    %v499 = vpop.permute.xlu0 %498
    %500 = vset.pattern.permute.xlu0 0
    %501 = vperm.xlu0 %500, %v462
    %v502 = vpop.permute.xlu0 %501
    %503 = vset.pattern.permute.xlu0 0
    %504 = vperm.xlu0 %503, %v463
    %v505 = vpop.permute.xlu0 %504
    %506 = vset.pattern.permute.xlu0 0
    %507 = vperm.xlu0 %506, %v464
    %v508 = vpop.permute.xlu0 %507
    %509 = vset.pattern.permute.xlu0 0
    %510 = vperm.xlu0 %509, %v465
    %v511 = vpop.permute.xlu0 %510
    %512 = vset.pattern.permute.xlu0 0
    %513 = vperm.xlu0 %512, %v466
    %v514 = vpop.permute.xlu0 %513
    %vm515 = vcmp.eq.s32.totalorder %v469, 1
    %vm516 = vcmp.eq.s32.totalorder %v472, 1
    %vm517 = vcmp.eq.s32.totalorder %v475, 1
    %vm518 = vcmp.eq.s32.totalorder %v478, 1
    %vm519 = vcmp.eq.s32.totalorder %v481, 1
    %vm520 = vcmp.eq.s32.totalorder %v484, 1
    %vm521 = vcmp.eq.s32.totalorder %v487, 1
    %vm522 = vcmp.eq.s32.totalorder %v490, 1
    %vm523 = vcmp.eq.s32.totalorder %v493, 1
    %vm524 = vcmp.eq.s32.totalorder %v496, 1
    %vm525 = vcmp.eq.s32.totalorder %v499, 1
    %vm526 = vcmp.eq.s32.totalorder %v502, 1
    %vm527 = vcmp.eq.s32.totalorder %v505, 1
    %vm528 = vcmp.eq.s32.totalorder %v508, 1
    %vm529 = vcmp.eq.s32.totalorder %v511, 1
    %vm530 = vcmp.eq.s32.totalorder %v514, 1
    %vm531 = vmand %vm419, %vm515
    %vm532 = vmand %vm420, %vm516
    %vm533 = vmand %vm421, %vm517
    %vm534 = vmand %vm422, %vm518
    %vm535 = vmand %vm423, %vm519
    %vm536 = vmand %vm424, %vm520
    %vm537 = vmand %vm425, %vm521
    %vm538 = vmand %vm426, %vm522
    %vm539 = vmand %vm427, %vm523
    %vm540 = vmand %vm428, %vm524
    %vm541 = vmand %vm429, %vm525
    %vm542 = vmand %vm430, %vm526
    %vm543 = vmand %vm431, %vm527
    %vm544 = vmand %vm432, %vm528
    %vm545 = vmand %vm433, %vm529
    %vm546 = vmand %vm434, %vm530
    %v547 = vsel %vm403, %v302, 3e+38
    %v548 = vsel %vm404, %v303, 3e+38
    %v549 = vsel %vm405, %v304, 3e+38
    %v550 = vsel %vm406, %v305, 3e+38
    %v551 = vsel %vm407, %v306, 3e+38
    %v552 = vsel %vm408, %v307, 3e+38
    %v553 = vsel %vm409, %v308, 3e+38
    %v554 = vsel %vm410, %v309, 3e+38
    %v555 = vsel %vm411, %v310, 3e+38
    %v556 = vsel %vm412, %v311, 3e+38
    %v557 = vsel %vm413, %v312, 3e+38
    %v558 = vsel %vm414, %v313, 3e+38
    %v559 = vsel %vm415, %v314, 3e+38
    %v560 = vsel %vm416, %v315, 3e+38
    %v561 = vsel %vm417, %v316, 3e+38
    %v562 = vsel %vm418, %v317, 3e+38
    %v563 = vsel %vm531, %v302, 0.0
    %v564 = vsel %vm532, %v303, 0.0
    %v565 = vsel %vm533, %v304, 0.0
    %v566 = vsel %vm534, %v305, 0.0
    %v567 = vsel %vm535, %v306, 0.0
    %v568 = vsel %vm536, %v307, 0.0
    %v569 = vsel %vm537, %v308, 0.0
    %v570 = vsel %vm538, %v309, 0.0
    %v571 = vsel %vm539, %v310, 0.0
    %v572 = vsel %vm540, %v311, 0.0
    %v573 = vsel %vm541, %v312, 0.0
    %v574 = vsel %vm542, %v313, 0.0
    %v575 = vsel %vm543, %v314, 0.0
    %v576 = vsel %vm544, %v315, 0.0
    %v577 = vsel %vm545, %v316, 0.0
    %v578 = vsel %vm546, %v317, 0.0
    %v579 = vld [vmem:[#allocation2] sm:$0x7]
    %v581 = vadd.s32 %v270, 128
    %v582 = vand.u32 %v579, 4294967040
    %v583 = vor.u32 %v582, %v581
    %v585 = vld [vmem:[#allocation3] sm:$0x3f]
    %v587 = vand.u32 %v585, 4294967040
    %v588 = vor.u32 %v587, %v581
    %v590 = vmin.f32 %v547, %v551
    %v591 = vmin.f32 %v548, %v552
    %v592 = vmin.f32 %v549, %v553
    %v593 = vmin.f32 %v550, %v554
    %v594 = vmin.f32 %v590, %v555
    %v595 = vmin.f32 %v591, %v556
    %v596 = vmin.f32 %v592, %v557
    %v597 = vmin.f32 %v593, %v558
    %v598 = vmin.f32 %v594, %v559
    %v599 = vmin.f32 %v595, %v560
    %v600 = vmin.f32 %v596, %v561
    %v601 = vmin.f32 %v597, %v562
    %vm602 = vcmask 1042432
    %v603 = vsel %vm602, %v583, inf
    %v604 = vmin.f32 %v598, %v603
    %v605 = vmin.f32 %v604, %v599
    %v606 = vmin.f32 %v600, %v601
    %v607 = vmin.f32 %v605, %v606
    %v608 = vrot.slane %v607, 4
    %v609 = vmin.f32 %v607, %v608
    %v610 = vrot.slane %v609, 2
    %v611 = vmin.f32 %v609, %v610
    %v612 = vrot.slane %v611, 1
    %v613 = vmin.f32 %v611, %v612
    %vm614 = vcmp.eq.f32.partialorder %v547, %v613
    %vm615 = vcmp.eq.f32.partialorder %v548, %v613
    %vm616 = vcmp.eq.f32.partialorder %v549, %v613
    %vm617 = vcmp.eq.f32.partialorder %v550, %v613
    %vm618 = vcmp.eq.f32.partialorder %v551, %v613
    %vm619 = vcmp.eq.f32.partialorder %v552, %v613
    %vm620 = vcmp.eq.f32.partialorder %v553, %v613
    %vm621 = vcmp.eq.f32.partialorder %v554, %v613
    %vm622 = vcmp.eq.f32.partialorder %v555, %v613
    %vm623 = vcmp.eq.f32.partialorder %v556, %v613
    %vm624 = vcmp.eq.f32.partialorder %v557, %v613
    %vm625 = vcmp.eq.f32.partialorder %v558, %v613
    %vm626 = vcmp.eq.f32.partialorder %v559, %v613
    %vm627 = vcmp.eq.f32.partialorder %v560, %v613
    %vm628 = vcmp.eq.f32.partialorder %v561, %v613
    %vm629 = vcmp.eq.f32.partialorder %v562, %v613
    %vm630 = vcmp.eq.f32.partialorder %v583, %v613
    %v631 = vsel %vm614, 3e+38, %v547
    %v632 = vsel %vm615, 3e+38, %v548
    %v633 = vsel %vm616, 3e+38, %v549
    %v634 = vsel %vm617, 3e+38, %v550
    %v635 = vsel %vm618, 3e+38, %v551
    %v636 = vsel %vm619, 3e+38, %v552
    %v637 = vsel %vm620, 3e+38, %v553
    %v638 = vsel %vm621, 3e+38, %v554
    %v639 = vsel %vm622, 3e+38, %v555
    %v640 = vsel %vm623, 3e+38, %v556
    %v641 = vsel %vm624, 3e+38, %v557
    %v642 = vsel %vm625, 3e+38, %v558
    %v643 = vsel %vm626, 3e+38, %v559
    %v644 = vsel %vm627, 3e+38, %v560
    %v645 = vsel %vm628, 3e+38, %v561
    %v646 = vsel %vm629, 3e+38, %v562
    %v647 = vsel %vm630, 3e+38, %v583
    %v648 = vmin.f32 %v631, %v635
    %v649 = vmin.f32 %v632, %v636
    %v650 = vmin.f32 %v633, %v637
    %v651 = vmin.f32 %v634, %v638
    %v652 = vmin.f32 %v648, %v639
    %v653 = vmin.f32 %v649, %v640
    %v654 = vmin.f32 %v650, %v641
    %v655 = vmin.f32 %v651, %v642
    %v656 = vmin.f32 %v652, %v643
    %v657 = vmin.f32 %v653, %v644
    %v658 = vmin.f32 %v654, %v645
    %v659 = vmin.f32 %v655, %v646
    %v660 = vsel %vm602, %v647, inf
    %v661 = vmin.f32 %v656, %v660
    %v662 = vmin.f32 %v661, %v657
    %v663 = vmin.f32 %v658, %v659
    %v664 = vmin.f32 %v662, %v663
    %v665 = vrot.slane %v664, 4
    %v666 = vmin.f32 %v664, %v665
    %v667 = vrot.slane %v666, 2
    %v668 = vmin.f32 %v666, %v667
    %v669 = vrot.slane %v668, 1
    %v670 = vmin.f32 %v668, %v669
    %vm671 = vcmp.eq.f32.partialorder %v631, %v670
    %vm672 = vcmp.eq.f32.partialorder %v632, %v670
    %vm673 = vcmp.eq.f32.partialorder %v633, %v670
    %vm674 = vcmp.eq.f32.partialorder %v634, %v670
    %vm675 = vcmp.eq.f32.partialorder %v635, %v670
    %vm676 = vcmp.eq.f32.partialorder %v636, %v670
    %vm677 = vcmp.eq.f32.partialorder %v637, %v670
    %vm678 = vcmp.eq.f32.partialorder %v638, %v670
    %vm679 = vcmp.eq.f32.partialorder %v639, %v670
    %vm680 = vcmp.eq.f32.partialorder %v640, %v670
    %vm681 = vcmp.eq.f32.partialorder %v641, %v670
    %vm682 = vcmp.eq.f32.partialorder %v642, %v670
    %vm683 = vcmp.eq.f32.partialorder %v643, %v670
    %vm684 = vcmp.eq.f32.partialorder %v644, %v670
    %vm685 = vcmp.eq.f32.partialorder %v645, %v670
    %vm686 = vcmp.eq.f32.partialorder %v646, %v670
    %vm687 = vcmp.eq.f32.partialorder %v647, %v670
    %v688 = vsel %vm671, 3e+38, %v631
    %v689 = vsel %vm672, 3e+38, %v632
    %v690 = vsel %vm673, 3e+38, %v633
    %v691 = vsel %vm674, 3e+38, %v634
    %v692 = vsel %vm675, 3e+38, %v635
    %v693 = vsel %vm676, 3e+38, %v636
    %v694 = vsel %vm677, 3e+38, %v637
    %v695 = vsel %vm678, 3e+38, %v638
    %v696 = vsel %vm679, 3e+38, %v639
    %v697 = vsel %vm680, 3e+38, %v640
    %v698 = vsel %vm681, 3e+38, %v641
    %v699 = vsel %vm682, 3e+38, %v642
    %v700 = vsel %vm683, 3e+38, %v643
    %v701 = vsel %vm684, 3e+38, %v644
    %v702 = vsel %vm685, 3e+38, %v645
    %v703 = vsel %vm686, 3e+38, %v646
    %v704 = vsel %vm687, 3e+38, %v647
    %v705 = vmin.f32 %v688, %v692
    %v706 = vmin.f32 %v689, %v693
    %v707 = vmin.f32 %v690, %v694
    %v708 = vmin.f32 %v691, %v695
    %v709 = vmin.f32 %v705, %v696
    %v710 = vmin.f32 %v706, %v697
    %v711 = vmin.f32 %v707, %v698
    %v712 = vmin.f32 %v708, %v699
    %v713 = vmin.f32 %v709, %v700
    %v714 = vmin.f32 %v710, %v701
    %v715 = vmin.f32 %v711, %v702
    %v716 = vmin.f32 %v712, %v703
    %v717 = vsel %vm602, %v704, inf
    %v718 = vmin.f32 %v713, %v717
    %v719 = vmin.f32 %v718, %v714
    %v720 = vmin.f32 %v715, %v716
    %v721 = vmin.f32 %v719, %v720
    %v722 = vrot.slane %v721, 4
    %v723 = vmin.f32 %v721, %v722
    %v724 = vrot.slane %v723, 2
    %v725 = vmin.f32 %v723, %v724
    %v726 = vrot.slane %v725, 1
    %v727 = vmin.f32 %v725, %v726
    %vm728 = vcmask 1040384
    %v729 = vsel %vm728, %v613, %v670
    %vm730 = vcmask 1041408
    %v731 = vsel %vm730, %v729, %v727
    %732 = vst [vmem:[#allocation2] sm:$0x7] %v731
    %v733 = vmax.f32 %v563, %v567
    %v734 = vmax.f32 %v564, %v568
    %v735 = vmax.f32 %v565, %v569
    %v736 = vmax.f32 %v566, %v570
    %v737 = vmax.f32 %v733, %v571
    %v738 = vmax.f32 %v734, %v572
    %v739 = vmax.f32 %v735, %v573
    %v740 = vmax.f32 %v736, %v574
    %v741 = vmax.f32 %v737, %v575
    %v742 = vmax.f32 %v738, %v576
    %v743 = vmax.f32 %v739, %v577
    %v744 = vmax.f32 %v740, %v578
    %vm745 = vcmask 1045504
    %v746 = vsel %vm745, %v588, -inf
    %v747 = vmax.f32 %v741, %v746
    %v748 = vmax.f32 %v747, %v742
    %v749 = vmax.f32 %v743, %v744
    %v750 = vmax.f32 %v748, %v749
    %v751 = vrot.slane %v750, 4
    %v752 = vmax.f32 %v750, %v751
    %v753 = vrot.slane %v752, 2
    %v754 = vmax.f32 %v752, %v753
    %v755 = vrot.slane %v754, 1
    %v756 = vmax.f32 %v754, %v755
    %vm757 = vcmp.eq.f32.partialorder %v563, %v756
    %vm758 = vcmp.eq.f32.partialorder %v564, %v756
    %vm759 = vcmp.eq.f32.partialorder %v565, %v756
    %vm760 = vcmp.eq.f32.partialorder %v566, %v756
    %vm761 = vcmp.eq.f32.partialorder %v567, %v756
    %vm762 = vcmp.eq.f32.partialorder %v568, %v756
    %vm763 = vcmp.eq.f32.partialorder %v569, %v756
    %vm764 = vcmp.eq.f32.partialorder %v570, %v756
    %vm765 = vcmp.eq.f32.partialorder %v571, %v756
    %vm766 = vcmp.eq.f32.partialorder %v572, %v756
    %vm767 = vcmp.eq.f32.partialorder %v573, %v756
    %vm768 = vcmp.eq.f32.partialorder %v574, %v756
    %vm769 = vcmp.eq.f32.partialorder %v575, %v756
    %vm770 = vcmp.eq.f32.partialorder %v576, %v756
    %vm771 = vcmp.eq.f32.partialorder %v577, %v756
    %vm772 = vcmp.eq.f32.partialorder %v578, %v756
    %vm773 = vcmp.eq.f32.partialorder %v588, %v756
    %v774 = vsel %vm757, 0.0, %v563
    %v775 = vsel %vm758, 0.0, %v564
    %v776 = vsel %vm759, 0.0, %v565
    %v777 = vsel %vm760, 0.0, %v566
    %v778 = vsel %vm761, 0.0, %v567
    %v779 = vsel %vm762, 0.0, %v568
    %v780 = vsel %vm763, 0.0, %v569
    %v781 = vsel %vm764, 0.0, %v570
    %v782 = vsel %vm765, 0.0, %v571
    %v783 = vsel %vm766, 0.0, %v572
    %v784 = vsel %vm767, 0.0, %v573
    %v785 = vsel %vm768, 0.0, %v574
    %v786 = vsel %vm769, 0.0, %v575
    %v787 = vsel %vm770, 0.0, %v576
    %v788 = vsel %vm771, 0.0, %v577
    %v789 = vsel %vm772, 0.0, %v578
    %v790 = vsel %vm773, 0.0, %v588
    %v791 = vmax.f32 %v774, %v778
    %v792 = vmax.f32 %v775, %v779
    %v793 = vmax.f32 %v776, %v780
    %v794 = vmax.f32 %v777, %v781
    %v795 = vmax.f32 %v791, %v782
    %v796 = vmax.f32 %v792, %v783
    %v797 = vmax.f32 %v793, %v784
    %v798 = vmax.f32 %v794, %v785
    %v799 = vmax.f32 %v795, %v786
    %v800 = vmax.f32 %v796, %v787
    %v801 = vmax.f32 %v797, %v788
    %v802 = vmax.f32 %v798, %v789
    %v803 = vsel %vm745, %v790, -inf
    %v804 = vmax.f32 %v799, %v803
    %v805 = vmax.f32 %v804, %v800
    %v806 = vmax.f32 %v801, %v802
    %v807 = vmax.f32 %v805, %v806
    %v808 = vrot.slane %v807, 4
    %v809 = vmax.f32 %v807, %v808
    %v810 = vrot.slane %v809, 2
    %v811 = vmax.f32 %v809, %v810
    %v812 = vrot.slane %v811, 1
    %v813 = vmax.f32 %v811, %v812
    %vm814 = vcmp.eq.f32.partialorder %v774, %v813
    %vm815 = vcmp.eq.f32.partialorder %v775, %v813
    %vm816 = vcmp.eq.f32.partialorder %v776, %v813
    %vm817 = vcmp.eq.f32.partialorder %v777, %v813
    %vm818 = vcmp.eq.f32.partialorder %v778, %v813
    %vm819 = vcmp.eq.f32.partialorder %v779, %v813
    %vm820 = vcmp.eq.f32.partialorder %v780, %v813
    %vm821 = vcmp.eq.f32.partialorder %v781, %v813
    %vm822 = vcmp.eq.f32.partialorder %v782, %v813
    %vm823 = vcmp.eq.f32.partialorder %v783, %v813
    %vm824 = vcmp.eq.f32.partialorder %v784, %v813
    %vm825 = vcmp.eq.f32.partialorder %v785, %v813
    %vm826 = vcmp.eq.f32.partialorder %v786, %v813
    %vm827 = vcmp.eq.f32.partialorder %v787, %v813
    %vm828 = vcmp.eq.f32.partialorder %v788, %v813
    %vm829 = vcmp.eq.f32.partialorder %v789, %v813
    %vm830 = vcmp.eq.f32.partialorder %v790, %v813
    %v831 = vsel %vm814, 0.0, %v774
    %v832 = vsel %vm815, 0.0, %v775
    %v833 = vsel %vm816, 0.0, %v776
    %v834 = vsel %vm817, 0.0, %v777
    %v835 = vsel %vm818, 0.0, %v778
    %v836 = vsel %vm819, 0.0, %v779
    %v837 = vsel %vm820, 0.0, %v780
    %v838 = vsel %vm821, 0.0, %v781
    %v839 = vsel %vm822, 0.0, %v782
    %v840 = vsel %vm823, 0.0, %v783
    %v841 = vsel %vm824, 0.0, %v784
    %v842 = vsel %vm825, 0.0, %v785
    %v843 = vsel %vm826, 0.0, %v786
    %v844 = vsel %vm827, 0.0, %v787
    %v845 = vsel %vm828, 0.0, %v788
    %v846 = vsel %vm829, 0.0, %v789
    %v847 = vsel %vm830, 0.0, %v790
    %v848 = vmax.f32 %v831, %v835
    %v849 = vmax.f32 %v832, %v836
    %v850 = vmax.f32 %v833, %v837
    %v851 = vmax.f32 %v834, %v838
    %v852 = vmax.f32 %v848, %v839
    %v853 = vmax.f32 %v849, %v840
    %v854 = vmax.f32 %v850, %v841
    %v855 = vmax.f32 %v851, %v842
    %v856 = vmax.f32 %v852, %v843
    %v857 = vmax.f32 %v853, %v844
    %v858 = vmax.f32 %v854, %v845
    %v859 = vmax.f32 %v855, %v846
    %v860 = vsel %vm745, %v847, -inf
    %v861 = vmax.f32 %v856, %v860
    %v862 = vmax.f32 %v861, %v857
    %v863 = vmax.f32 %v858, %v859
    %v864 = vmax.f32 %v862, %v863
    %v865 = vrot.slane %v864, 4
    %v866 = vmax.f32 %v864, %v865
    %v867 = vrot.slane %v866, 2
    %v868 = vmax.f32 %v866, %v867
    %v869 = vrot.slane %v868, 1
    %v870 = vmax.f32 %v868, %v869
    %vm871 = vcmp.eq.f32.partialorder %v831, %v870
    %vm872 = vcmp.eq.f32.partialorder %v832, %v870
    %vm873 = vcmp.eq.f32.partialorder %v833, %v870
    %vm874 = vcmp.eq.f32.partialorder %v834, %v870
    %vm875 = vcmp.eq.f32.partialorder %v835, %v870
    %vm876 = vcmp.eq.f32.partialorder %v836, %v870
    %vm877 = vcmp.eq.f32.partialorder %v837, %v870
    %vm878 = vcmp.eq.f32.partialorder %v838, %v870
    %vm879 = vcmp.eq.f32.partialorder %v839, %v870
    %vm880 = vcmp.eq.f32.partialorder %v840, %v870
    %vm881 = vcmp.eq.f32.partialorder %v841, %v870
    %vm882 = vcmp.eq.f32.partialorder %v842, %v870
    %vm883 = vcmp.eq.f32.partialorder %v843, %v870
    %vm884 = vcmp.eq.f32.partialorder %v844, %v870
    %vm885 = vcmp.eq.f32.partialorder %v845, %v870
    %vm886 = vcmp.eq.f32.partialorder %v846, %v870
    %vm887 = vcmp.eq.f32.partialorder %v847, %v870
    %v888 = vsel %vm871, 0.0, %v831
    %v889 = vsel %vm872, 0.0, %v832
    %v890 = vsel %vm873, 0.0, %v833
    %v891 = vsel %vm874, 0.0, %v834
    %v892 = vsel %vm875, 0.0, %v835
    %v893 = vsel %vm876, 0.0, %v836
    %v894 = vsel %vm877, 0.0, %v837
    %v895 = vsel %vm878, 0.0, %v838
    %v896 = vsel %vm879, 0.0, %v839
    %v897 = vsel %vm880, 0.0, %v840
    %v898 = vsel %vm881, 0.0, %v841
    %v899 = vsel %vm882, 0.0, %v842
    %v900 = vsel %vm883, 0.0, %v843
    %v901 = vsel %vm884, 0.0, %v844
    %v902 = vsel %vm885, 0.0, %v845
    %v903 = vsel %vm886, 0.0, %v846
    %v904 = vsel %vm887, 0.0, %v847
    %v905 = vmax.f32 %v888, %v892
    %v906 = vmax.f32 %v889, %v893
    %v907 = vmax.f32 %v890, %v894
    %v908 = vmax.f32 %v891, %v895
    %v909 = vmax.f32 %v905, %v896
    %v910 = vmax.f32 %v906, %v897
    %v911 = vmax.f32 %v907, %v898
    %v912 = vmax.f32 %v908, %v899
    %v913 = vmax.f32 %v909, %v900
    %v914 = vmax.f32 %v910, %v901
    %v915 = vmax.f32 %v911, %v902
    %v916 = vmax.f32 %v912, %v903
    %v917 = vsel %vm745, %v904, -inf
    %v918 = vmax.f32 %v913, %v917
    %v919 = vmax.f32 %v918, %v914
    %v920 = vmax.f32 %v915, %v916
    %v921 = vmax.f32 %v919, %v920
    %v922 = vrot.slane %v921, 4
    %v923 = vmax.f32 %v921, %v922
    %v924 = vrot.slane %v923, 2
    %v925 = vmax.f32 %v923, %v924
    %v926 = vrot.slane %v925, 1
    %v927 = vmax.f32 %v925, %v926
    %vm928 = vcmp.eq.f32.partialorder %v888, %v927
    %vm929 = vcmp.eq.f32.partialorder %v889, %v927
    %vm930 = vcmp.eq.f32.partialorder %v890, %v927
    %vm931 = vcmp.eq.f32.partialorder %v891, %v927
    %vm932 = vcmp.eq.f32.partialorder %v892, %v927
    %vm933 = vcmp.eq.f32.partialorder %v893, %v927
    %vm934 = vcmp.eq.f32.partialorder %v894, %v927
    %vm935 = vcmp.eq.f32.partialorder %v895, %v927
    %vm936 = vcmp.eq.f32.partialorder %v896, %v927
    %vm937 = vcmp.eq.f32.partialorder %v897, %v927
    %vm938 = vcmp.eq.f32.partialorder %v898, %v927
    %vm939 = vcmp.eq.f32.partialorder %v899, %v927
    %vm940 = vcmp.eq.f32.partialorder %v900, %v927
    %vm941 = vcmp.eq.f32.partialorder %v901, %v927
    %vm942 = vcmp.eq.f32.partialorder %v902, %v927
    %vm943 = vcmp.eq.f32.partialorder %v903, %v927
    %vm944 = vcmp.eq.f32.partialorder %v904, %v927
    %v945 = vsel %vm928, 0.0, %v888
    %v946 = vsel %vm929, 0.0, %v889
    %v947 = vsel %vm930, 0.0, %v890
    %v948 = vsel %vm931, 0.0, %v891
    %v949 = vsel %vm932, 0.0, %v892
    %v950 = vsel %vm933, 0.0, %v893
    %v951 = vsel %vm934, 0.0, %v894
    %v952 = vsel %vm935, 0.0, %v895
    %v953 = vsel %vm936, 0.0, %v896
    %v954 = vsel %vm937, 0.0, %v897
    %v955 = vsel %vm938, 0.0, %v898
    %v956 = vsel %vm939, 0.0, %v899
    %v957 = vsel %vm940, 0.0, %v900
    %v958 = vsel %vm941, 0.0, %v901
    %v959 = vsel %vm942, 0.0, %v902
    %v960 = vsel %vm943, 0.0, %v903
    %v961 = vsel %vm944, 0.0, %v904
    %v962 = vmax.f32 %v945, %v949
    %v963 = vmax.f32 %v946, %v950
    %v964 = vmax.f32 %v947, %v951
    %v965 = vmax.f32 %v948, %v952
    %v966 = vmax.f32 %v962, %v953
    %v967 = vmax.f32 %v963, %v954
    %v968 = vmax.f32 %v964, %v955
    %v969 = vmax.f32 %v965, %v956
    %v970 = vmax.f32 %v966, %v957
    %v971 = vmax.f32 %v967, %v958
    %v972 = vmax.f32 %v968, %v959
    %v973 = vmax.f32 %v969, %v960
    %v974 = vsel %vm745, %v961, -inf
    %v975 = vmax.f32 %v970, %v974
    %v976 = vmax.f32 %v975, %v971
    %v977 = vmax.f32 %v972, %v973
    %v978 = vmax.f32 %v976, %v977
    %v979 = vrot.slane %v978, 4
    %v980 = vmax.f32 %v978, %v979
    %v981 = vrot.slane %v980, 2
    %v982 = vmax.f32 %v980, %v981
    %v983 = vrot.slane %v982, 1
    %v984 = vmax.f32 %v982, %v983
    %vm985 = vcmp.eq.f32.partialorder %v945, %v984
    %vm986 = vcmp.eq.f32.partialorder %v946, %v984
    %vm987 = vcmp.eq.f32.partialorder %v947, %v984
    %vm988 = vcmp.eq.f32.partialorder %v948, %v984
    %vm989 = vcmp.eq.f32.partialorder %v949, %v984
    %vm990 = vcmp.eq.f32.partialorder %v950, %v984
    %vm991 = vcmp.eq.f32.partialorder %v951, %v984
    %vm992 = vcmp.eq.f32.partialorder %v952, %v984
    %vm993 = vcmp.eq.f32.partialorder %v953, %v984
    %vm994 = vcmp.eq.f32.partialorder %v954, %v984
    %vm995 = vcmp.eq.f32.partialorder %v955, %v984
    %vm996 = vcmp.eq.f32.partialorder %v956, %v984
    %vm997 = vcmp.eq.f32.partialorder %v957, %v984
    %vm998 = vcmp.eq.f32.partialorder %v958, %v984
    %vm999 = vcmp.eq.f32.partialorder %v959, %v984
    %vm1000 = vcmp.eq.f32.partialorder %v960, %v984
    %vm1001 = vcmp.eq.f32.partialorder %v961, %v984
    %v1002 = vsel %vm985, 0.0, %v945
    %v1003 = vsel %vm986, 0.0, %v946
    %v1004 = vsel %vm987, 0.0, %v947
    %v1005 = vsel %vm988, 0.0, %v948
    %v1006 = vsel %vm989, 0.0, %v949
    %v1007 = vsel %vm990, 0.0, %v950
    %v1008 = vsel %vm991, 0.0, %v951
    %v1009 = vsel %vm992, 0.0, %v952
    %v1010 = vsel %vm993, 0.0, %v953
    %v1011 = vsel %vm994, 0.0, %v954
    %v1012 = vsel %vm995, 0.0, %v955
    %v1013 = vsel %vm996, 0.0, %v956
    %v1014 = vsel %vm997, 0.0, %v957
    %v1015 = vsel %vm998, 0.0, %v958
    %v1016 = vsel %vm999, 0.0, %v959
    %v1017 = vsel %vm1000, 0.0, %v960
    %v1018 = vsel %vm1001, 0.0, %v961
    %v1019 = vmax.f32 %v1002, %v1006
    %v1020 = vmax.f32 %v1003, %v1007
    %v1021 = vmax.f32 %v1004, %v1008
    %v1022 = vmax.f32 %v1005, %v1009
    %v1023 = vmax.f32 %v1019, %v1010
    %v1024 = vmax.f32 %v1020, %v1011
    %v1025 = vmax.f32 %v1021, %v1012
    %v1026 = vmax.f32 %v1022, %v1013
    %v1027 = vmax.f32 %v1023, %v1014
    %v1028 = vmax.f32 %v1024, %v1015
    %v1029 = vmax.f32 %v1025, %v1016
    %v1030 = vmax.f32 %v1026, %v1017
    %v1031 = vsel %vm745, %v1018, -inf
    %v1032 = vmax.f32 %v1027, %v1031
    %v1033 = vmax.f32 %v1032, %v1028
    %v1034 = vmax.f32 %v1029, %v1030
    %v1035 = vmax.f32 %v1033, %v1034
    %v1036 = vrot.slane %v1035, 4
    %v1037 = vmax.f32 %v1035, %v1036
    %v1038 = vrot.slane %v1037, 2
    %v1039 = vmax.f32 %v1037, %v1038
    %v1040 = vrot.slane %v1039, 1
    %v1041 = vmax.f32 %v1039, %v1040
    %v1042 = vsel %vm728, %v756, %v813
    %v1043 = vsel %vm730, %v1042, %v870
    %v1044 = vsel %vm602, %v1043, %v927
    %vm1045 = vcmask 1043456
    %v1046 = vsel %vm1045, %v1044, %v984
    %vm1047 = vcmask 1044480
    %v1048 = vsel %vm1047, %v1046, %v1041
    %1049 = vst [vmem:[#allocation3] sm:$0x3f] %v1048
    // Predicated region
    $region22: #{tpu_custom_call.1} parent=1 // pred_check
      %p1050 = pneg %p22
    $region23: #{tpu_custom_call.1} parent=1 // pred_check_branch
      %1052 = sbr.rel (%p1050) target = $region25
    $region24: #{tpu_custom_call.1} parent=1 // pred_region
      %v1053 = vld [vmem:[#allocation2 + $0x2] sm:$0x1]
      %v1054 = vsub.f32 %v1053, 2.0
      %v1055 = vld [vmem:[#allocation3 + $0x5] sm:$0x1]
      %v1056 = vsub.f32 %v1055, 2.0
      %v1057 = vsub.f32 %v1056, %v1054
      %v1058 = vadd.f32 %v1057, 0.0
      %v1059 = vmax.f32 %v1058, 0.0
      %1060 = vst [vmem:[#allocation4] sm:$0x1] %v1059
      %vm1061 = vcmp.gt.f32.partialorder %v1054, %v1056
      %v1062 = vsel %vm1061, 1, 0
      %v1063 = vcvt.s32.f32 %v1062
      %1064 = vst [vmem:[#allocation6] sm:$0x1] %v1063
    $region25: #{tpu_custom_call.1} parent=1 // pred_fallthru
      _
    // Predicated region
    $region26: #{tpu_custom_call.1} parent=1 // pred_check
      _
    $region27: #{tpu_custom_call.1} parent=1 // pred_check_branch
      %1066 = sbr.rel (0) target = $region29
    $region28: #{tpu_custom_call.1} parent=1 // pred_region
      %s1068 = ssub.s32 16, 16
      %1069 = vsyncadd [#allocation5], %s1068
      %s1071 = sshll.u32 [#allocation4], 4
      %s1072 = int_to_ptr.vmem [resolvable:$true] %s1071
      %1074 = dma.vmem_to_hbm [thread:$0]  %s1072, 16, %s4, [#allocation5]
    $region29: #{tpu_custom_call.1} parent=1 // pred_fallthru
      _
    // Predicated region
    $region30: #{tpu_custom_call.1} parent=1 // pred_check
      _
    $region31: #{tpu_custom_call.1} parent=1 // pred_check_branch
      %1076 = sbr.rel (0) target = $region33
    $region32: #{tpu_custom_call.1} parent=1 // pred_region
      %s1078 = ssub.s32 16, 16
      %1079 = vsyncadd [#allocation7], %s1078
      %s1081 = sshll.u32 [#allocation6], 4
      %s1082 = int_to_ptr.vmem [resolvable:$true] %s1081
      %1084 = dma.vmem_to_hbm [thread:$0]  %s1082, 16, %s5, [#allocation7]
    $region33: #{tpu_custom_call.1} parent=1 // pred_fallthru
      _
    // Predicated region
    $region34: #{tpu_custom_call.1} parent=1 // pred_check
      _
    $region35: #{tpu_custom_call.1} parent=1 // pred_check_branch
      %1086 = sbr.rel (0) target = $region37
    $region36: #{tpu_custom_call.1} parent=1 // pred_region
      %1087 = dma.done [#allocation5], 16
    $region37: #{tpu_custom_call.1} parent=1 // pred_fallthru
      _
    // Predicated region
    $region38: #{tpu_custom_call.1} parent=1 // pred_check
      _
    $region39: #{tpu_custom_call.1} parent=1 // pred_check_branch
      %1089 = sbr.rel (0) target = $region41
    $region40: #{tpu_custom_call.1} parent=1 // pred_region
      %1090 = dma.done [#allocation7], 16
    $region41: #{tpu_custom_call.1} parent=1 // pred_fallthru
      _
    %1091 = vsyncpa [#allocation5], 1
    %1092 = vsyncpa [#allocation7], 1

</llo_original>
